<compile_context>
chip_gen: v7x
topology: tpu7x:2x2x1
jax: 0.10.0
libtpu: 0.0.40
codegen_flags: <defaults>
</compile_context>

<pallas_src>
import jax
import jax.numpy as jnp
from jax import lax
from jax.experimental import pallas as pl
from jax.experimental.pallas import tpu as pltpu


def _vmem_limit_bytes():
    """Generation-aware scoped-VMEM limit with ~12.5% headroom."""
    cap = 64 * 1024 * 1024
    try:
        info = pltpu.get_tpu_info()
        cap = int(getattr(info, "vmem_capacity_bytes", cap)) or cap
    except Exception:
        pass
    return max(32 * 1024 * 1024, (cap * 7) // 8)


_VMEM_LIMIT = _vmem_limit_bytes()


def _pick_tile(n, max_tile, dtype=jnp.float32):
    """Largest tile <= max_tile that tiles n exactly, respecting packed-sublane
    multiples (8 for 4-byte, 16 for 2-byte, 32 for 1-byte dtypes)."""
    sub = {4: 8, 2: 16, 1: 32}.get(jnp.dtype(dtype).itemsize, 8)
    if n <= max_tile:
        return n
    t = (max_tile // sub) * sub
    while t >= sub:
        if n % t == 0:
            return t
        t -= sub
    # Full dimension is always a legal block; may be large for awkward n
    # (VMEM hazard for huge non-factorable S/E, noted in review).
    return n


# ---------------------------------------------------------------------------
# Kernel 1: fused Q/K/V projection — one (tm, E) x (3E, E)^T matmul per tile.
# ---------------------------------------------------------------------------
def _qkv_proj_kernel(x_ref, w_ref, b_ref, q_ref, k_ref, v_ref):
    e = q_ref.shape[-1]
    x = x_ref[...]                                             # (tm, E), input dtype
    # NT contraction: x @ W_cat.T -> (tm, 3E), f32 MXU accumulation. One wide
    # MXU pass (N = 3E) instead of three small-N matmuls.
    y = lax.dot_general(x, w_ref[...], (((1,), (1,)), ((), ())),
                        preferred_element_type=jnp.float32)
    y = y + b_ref[...]                                         # (tm, 3E)
    q_ref[...] = y[:, :e].astype(q_ref.dtype)
    k_ref[...] = y[:, e:2 * e].astype(k_ref.dtype)
    v_ref[...] = y[:, 2 * e:].astype(v_ref.dtype)


def _qkv_projection(x2d, w_cat, b_cat, *, max_rows=512):
    M, E = x2d.shape
    tm = _pick_tile(M, max_rows, x2d.dtype)
    grid = (M // tm,)

    x_spec = pl.BlockSpec((tm, E), lambda i: (i, 0))
    w_spec = pl.BlockSpec((3 * E, E), lambda i: (0, 0))        # resident weight block
    b_spec = pl.BlockSpec((1, 3 * E), lambda i: (0, 0))
    out_spec = pl.BlockSpec((tm, E), lambda i: (i, 0))
    out_sds = jax.ShapeDtypeStruct((M, E), x2d.dtype)

    return pl.pallas_call(
        _qkv_proj_kernel,
        out_shape=(out_sds, out_sds, out_sds),
        grid_spec=pltpu.PrefetchScalarGridSpec(
            num_scalar_prefetch=0,
            grid=grid,
            in_specs=[x_spec, w_spec, b_spec],
            out_specs=[out_spec, out_spec, out_spec],
        ),
        compiler_params=pltpu.CompilerParams(
            dimension_semantics=("parallel",),
            vmem_limit_bytes=_VMEM_LIMIT,
        ),
    )(x2d, w_cat, b_cat)


# ---------------------------------------------------------------------------
# Kernel 2: softmax attention with online-softmax accumulation over kv tiles.
# ---------------------------------------------------------------------------
def _attention_kernel(q_ref, k_ref, v_ref, o_ref, m_sc, l_sc, acc_sc):
    kv_idx = pl.program_id(2)

    @pl.when(kv_idx == 0)
    def _():
        m_sc[...] = jnp.full_like(m_sc, -jnp.inf)
        l_sc[...] = jnp.zeros_like(l_sc)
        acc_sc[...] = jnp.zeros_like(acc_sc)

    q = q_ref[0]                                               # (tq, E)
    k = k_ref[0]                                               # (tk, E)
    v = v_ref[0]                                               # (tk, E)

    # scores = q @ k^T, contracted over E (no transpose materialized).
    s = lax.dot_general(q, k, (((1,), (1,)), ((), ())),
                        preferred_element_type=jnp.float32)    # (tq, tk)

    m_prev = m_sc[...]                                         # (tq, 1)
    m_new = jnp.maximum(m_prev, jnp.max(s, axis=-1, keepdims=True))
    alpha = jnp.exp(m_prev - m_new)
    p = jnp.exp(s - m_new)                                     # (tq, tk)

    l_sc[...] = alpha * l_sc[...] + jnp.sum(p, axis=-1, keepdims=True)
    acc_sc[...] = alpha * acc_sc[...] + jnp.dot(
        p.astype(v.dtype), v, preferred_element_type=jnp.float32)
    m_sc[...] = m_new

    # Epilogue (runs once per (b, q-tile)): approx reciprocal on the EUP slot,
    # plus one Newton step to restore ~f32 accuracy at negligible cost.
    @pl.when(kv_idx == pl.num_programs(2) - 1)
    def _():
        l = l_sc[...]
        inv_l = pl.reciprocal(l, approx=True)
        inv_l = inv_l * (2.0 - l * inv_l)
        o_ref[0] = (acc_sc[...] * inv_l).astype(o_ref.dtype)


def _flash_attention(q, k, v, *, max_q=256, max_kv=256):
    B, S, E = q.shape
    tq = _pick_tile(S, max_q, q.dtype)
    tk = _pick_tile(S, max_kv, k.dtype)
    # kv (reduction) axis must stay innermost: the output tile is written only
    # on the last kv step and its BlockSpec is constant in kv.
    grid = (B, S // tq, S // tk)

    q_spec = pl.BlockSpec((1, tq, E), lambda b, qi, ki: (b, qi, 0))
    kv_spec = pl.BlockSpec((1, tk, E), lambda b, qi, ki: (b, ki, 0))
    o_spec = pl.BlockSpec((1, tq, E), lambda b, qi, ki: (b, qi, 0))

    return pl.pallas_call(
        _attention_kernel,
        out_shape=jax.ShapeDtypeStruct((B, S, E), q.dtype),
        grid_spec=pltpu.PrefetchScalarGridSpec(
            num_scalar_prefetch=0,
            grid=grid,
            in_specs=[q_spec, kv_spec, kv_spec],
            out_specs=o_spec,
            scratch_shapes=[
                pltpu.VMEM((tq, 1), jnp.float32),   # running max  m
                pltpu.VMEM((tq, 1), jnp.float32),   # running denom l
                pltpu.VMEM((tq, E), jnp.float32),   # output accumulator
            ],
        ),
        compiler_params=pltpu.CompilerParams(
            dimension_semantics=("parallel", "parallel", "arbitrary"),
            vmem_limit_bytes=_VMEM_LIMIT,
        ),
    )(q, k, v)


def self_attention(x, wq, bq, wk, bk, wv, bv):
    """x: (B, S, E); weights in nn.Linear (out, in) layout (E, E); biases (E,)."""
    B, S, E = x.shape
    # Concatenate the three Linear weights along the OUT axis -> one (3E, E)
    # weight and one (1, 3E) bias; no transposes are materialized (the kernel
    # contracts against the "in" axis directly).
    w_cat = jnp.concatenate([wq, wk, wv], axis=0)              # (3E, E)
    b_cat = jnp.concatenate([bq, bk, bv], axis=0).reshape(1, 3 * E)

    x2d = x.reshape(B * S, E)
    q2d, k2d, v2d = _qkv_projection(x2d, w_cat, b_cat)
    q = q2d.reshape(B, S, E)
    k = k2d.reshape(B, S, E)
    v = v2d.reshape(B, S, E)
    return _flash_attention(q, k, v)


if __name__ == "__main__":
    B, S, E = 2, 8, 32

    key = jax.random.PRNGKey(0)
    kx, kwq, kbq, kwk, kbk, kwv, kbv = jax.random.split(key, 7)

    x = jax.random.normal(kx, (B, S, E), dtype=jnp.float32)

    # nn.Linear parameters: weight (out, in), bias (out,); forward is x @ W.T + b.
    Wq = jax.random.normal(kwq, (E, E), dtype=jnp.float32) * 0.1
    bq = jax.random.normal(kbq, (E,), dtype=jnp.float32) * 0.1
    Wk = jax.random.normal(kwk, (E, E), dtype=jnp.float32) * 0.1
    bk = jax.random.normal(kbk, (E,), dtype=jnp.float32) * 0.1
    Wv = jax.random.normal(kwv, (E, E), dtype=jnp.float32) * 0.1
    bv = jax.random.normal(kbv, (E,), dtype=jnp.float32) * 0.1

    out = self_attention(x, Wq, bq, Wk, bk, Wv, bv)
    out = jax.block_until_ready(out)

    # Pure-JAX reference mirroring the PyTorch forward.
    q = x @ Wq.T + bq
    k = x @ Wk.T + bk
    v = x @ Wv.T + bv
    scores = jnp.einsum("bqe,bke->bqk", q, k)
    weights = jax.nn.softmax(scores, axis=-1)
    ref = jnp.einsum("bqk,bke->bqe", weights, v)

    assert out.shape == (B, S, E)
    # Tolerance covers the EUP approx-reciprocal (+ Newton refinement) epilogue.
    assert jnp.allclose(out, ref, atol=1e-3, rtol=1e-3)
    print("KERNEL_OK")
</pallas_src>

<mosaic_0001>
module attributes {stable_mosaic.version = 11 : i64} {
  func.func @_qkv_proj_kernel(%arg0: i32, %arg1: memref<16x32xf32, #tpu.memory_space<vmem>>, %arg2: memref<96x32xf32, #tpu.memory_space<vmem>>, %arg3: memref<1x96xf32, #tpu.memory_space<vmem>>, %arg4: memref<16x32xf32, #tpu.memory_space<vmem>>, %arg5: memref<16x32xf32, #tpu.memory_space<vmem>>, %arg6: memref<16x32xf32, #tpu.memory_space<vmem>>) attributes {dimension_semantics = [#tpu.dimension_semantics<parallel>], iteration_bounds = array<i64: 1>, scalar_prefetch = 0 : i64, scratch_operands = 0 : i64, tpu.core_type = #tpu.core_type<tc>, window_params = [{transform_indices = @transform_0, window_bounds = array<i64: 16, 32>}, {pipeline_mode = #tpu.pipeline_mode<synchronous>, transform_indices = @transform_1, window_bounds = array<i64: 96, 32>}, {pipeline_mode = #tpu.pipeline_mode<synchronous>, transform_indices = @transform_2, window_bounds = array<i64: 1, 96>}, {transform_indices = @transform_3, window_bounds = array<i64: 16, 32>}, {transform_indices = @transform_4, window_bounds = array<i64: 16, 32>}, {transform_indices = @transform_5, window_bounds = array<i64: 16, 32>}]} {
    %c0 = arith.constant 0 : index
    %c0_0 = arith.constant 0 : index
    %0 = vector.load %arg1[%c0, %c0_0] : memref<16x32xf32, #tpu.memory_space<vmem>>, vector<16x32xf32>
    %c0_1 = arith.constant 0 : index
    %c0_2 = arith.constant 0 : index
    %1 = vector.load %arg2[%c0_1, %c0_2] : memref<96x32xf32, #tpu.memory_space<vmem>>, vector<96x32xf32>
    %cst = arith.constant dense<0.000000e+00> : vector<16x96xf32>
    %2 = tpu.matmul %0, %1, %cst {dimension_numbers = #tpu.dot_dimension_numbers<[1], [1], [0], [0], [0, 0, 1, 0], [], []>} : vector<16x32xf32>, vector<96x32xf32>, vector<16x96xf32> -> vector<16x96xf32>
    %c0_3 = arith.constant 0 : index
    %c0_4 = arith.constant 0 : index
    %3 = vector.load %arg3[%c0_3, %c0_4] : memref<1x96xf32, #tpu.memory_space<vmem>>, vector<1x96xf32>
    %4 = vector.broadcast %3 : vector<1x96xf32> to vector<16x96xf32>
    %5 = arith.addf %2, %4 : vector<16x96xf32>
    %6 = vector.extract_strided_slice %5 {offsets = [0, 0], sizes = [16, 32], strides = [1, 1]} : vector<16x96xf32> to vector<16x32xf32>
    %c0_5 = arith.constant 0 : index
    %c0_6 = arith.constant 0 : index
    %7 = vector.load %arg4[%c0_5, %c0_6] : memref<16x32xf32, #tpu.memory_space<vmem>>, vector<16x32xf32>
    tpu.vector_store %arg4[%c0_5, %c0_6], %6 {strides = array<i32>} : memref<16x32xf32, #tpu.memory_space<vmem>>, vector<16x32xf32>,
    %8 = vector.extract_strided_slice %5 {offsets = [0, 32], sizes = [16, 32], strides = [1, 1]} : vector<16x96xf32> to vector<16x32xf32>
    %c0_7 = arith.constant 0 : index
    %c0_8 = arith.constant 0 : index
    %9 = vector.load %arg5[%c0_7, %c0_8] : memref<16x32xf32, #tpu.memory_space<vmem>>, vector<16x32xf32>
    tpu.vector_store %arg5[%c0_7, %c0_8], %8 {strides = array<i32>} : memref<16x32xf32, #tpu.memory_space<vmem>>, vector<16x32xf32>,
    %10 = vector.extract_strided_slice %5 {offsets = [0, 64], sizes = [16, 32], strides = [1, 1]} : vector<16x96xf32> to vector<16x32xf32>
    %c0_9 = arith.constant 0 : index
    %c0_10 = arith.constant 0 : index
    %11 = vector.load %arg6[%c0_9, %c0_10] : memref<16x32xf32, #tpu.memory_space<vmem>>, vector<16x32xf32>
    tpu.vector_store %arg6[%c0_9, %c0_10], %10 {strides = array<i32>} : memref<16x32xf32, #tpu.memory_space<vmem>>, vector<16x32xf32>,
    return
  }
  func.func @transform_0(%arg0: i32) -> (i32, i32) {
    %c0_i32 = arith.constant 0 : i32
    %c0_i32_0 = arith.constant 0 : i32
    return %arg0, %c0_i32 : i32, i32
  }
  func.func @transform_1(%arg0: i32) -> (i32, i32) {
    %c0_i32 = arith.constant 0 : i32
    %c0_i32_0 = arith.constant 0 : i32
    %c0_i32_1 = arith.constant 0 : i32
    return %c0_i32, %c0_i32_0 : i32, i32
  }
  func.func @transform_2(%arg0: i32) -> (i32, i32) {
    %c0_i32 = arith.constant 0 : i32
    %c0_i32_0 = arith.constant 0 : i32
    %c0_i32_1 = arith.constant 0 : i32
    return %c0_i32, %c0_i32_0 : i32, i32
  }
  func.func @transform_3(%arg0: i32) -> (i32, i32) {
    %c0_i32 = arith.constant 0 : i32
    %c0_i32_0 = arith.constant 0 : i32
    return %arg0, %c0_i32 : i32, i32
  }
  func.func @transform_4(%arg0: i32) -> (i32, i32) {
    %c0_i32 = arith.constant 0 : i32
    %c0_i32_0 = arith.constant 0 : i32
    return %arg0, %c0_i32 : i32, i32
  }
  func.func @transform_5(%arg0: i32) -> (i32, i32) {
    %c0_i32 = arith.constant 0 : i32
    %c0_i32_0 = arith.constant 0 : i32
    return %arg0, %c0_i32 : i32, i32
  }
}

</mosaic_0001>

<llo_original>
// kernel: tpu_custom_call.1
$region0: #{tpu_custom_call.1}
  #allocation0 [shape = 'u32[]', space=smem, size = 0x4, offset = 0x4, fixed_abs, tag = 'smem constant byte address 0x4 - core index']
  #allocation1 [shape = 'u32[144,128]{1,0:T(1,128)}', space=vmem, size = 0x12000, scoped, tag = 'internal scratch']
  %s0 = inlined_call_operand.vmem [shape: f32[16,32], index: 0, kind: input, shape index: {}]
  %s1 = inlined_call_operand.vmem [shape: f32[96,32], index: 1, kind: input, shape index: {}]
  %s2 = inlined_call_operand.vmem [shape: f32[1,96], index: 2, kind: input, shape index: {}]
  %s3 = inlined_call_operand.hbm [shape: f32[16,32], index: 3, kind: output, shape index: {0}]
  %s4 = inlined_call_operand.hbm [shape: f32[16,32], index: 4, kind: output, shape index: {1}]
  %s5 = inlined_call_operand.hbm [shape: f32[16,32], index: 5, kind: output, shape index: {2}]
  %6 = xla_tuple %s3, %s4, %s5
  %s7 = sld [smem:[#allocation0]]
  $region38: #{tpu_custom_call.1} parent=0
    _
  %s9 = ssub.s32 1, %s7
  %s10 = scalar_select 0, %s9, %s7
  $region1: #{tpu_custom_call.1} parent=0
    #allocation2 [shape = 'u8[8192]{0}', space=vmem, size = 0x2000, scoped, tag = 'output window, operand 0, single buffered']
    #allocation3 [shape = 's32[1]{0}', space=sflag, size = 0x4, scoped, tag = 'scoped memory for tpu_custom_call.1']
    #allocation4 [shape = 'u8[8192]{0}', space=vmem, size = 0x2000, scoped, tag = 'output window, operand 1, single buffered']
    #allocation5 [shape = 's32[1]{0}', space=sflag, size = 0x4, scoped, tag = 'scoped memory for tpu_custom_call.1']
    #allocation6 [shape = 'u8[8192]{0}', space=vmem, size = 0x2000, scoped, tag = 'output window, operand 2, single buffered']
    %11 = vsyncpa [#allocation3], 0
    %12 = vsyncpa [#allocation5], 0
    // Predicated region
    $region2: #{tpu_custom_call.1} parent=1 // pred_check
      _
    $region3: #{tpu_custom_call.1} parent=1 // pred_check_branch
      %14 = sbr.rel (0) target = $region5
    $region4: #{tpu_custom_call.1} parent=1 // pred_region
      _
    $region5: #{tpu_custom_call.1} parent=1 // pred_fallthru
      _
    // Predicated region
    $region6: #{tpu_custom_call.1} parent=1 // pred_check
      _
    $region7: #{tpu_custom_call.1} parent=1 // pred_check_branch
      %16 = sbr.rel (0) target = $region9
    $region8: #{tpu_custom_call.1} parent=1 // pred_region
      _
    $region9: #{tpu_custom_call.1} parent=1 // pred_fallthru
      _
    // Predicated region
    $region10: #{tpu_custom_call.1} parent=1 // pred_check
      _
    $region11: #{tpu_custom_call.1} parent=1 // pred_check_branch
      %18 = sbr.rel (0) target = $region13
    $region12: #{tpu_custom_call.1} parent=1 // pred_region
      _
    $region13: #{tpu_custom_call.1} parent=1 // pred_fallthru
      _
    %v19 = vld [vmem:[%s0] sm:$0xff]
    %v20 = vld [vmem:[%s0 + $0x8] sm:$0xff]
    %v21 = vld [vmem:[%s1] sm:$0xff]
    %v22 = vld [vmem:[%s1 + $0x8] sm:$0xff]
    %v23 = vld [vmem:[%s1 + $0x10] sm:$0xff]
    %v24 = vld [vmem:[%s1 + $0x18] sm:$0xff]
    %v25 = vld [vmem:[%s1 + $0x20] sm:$0xff]
    %v26 = vld [vmem:[%s1 + $0x28] sm:$0xff]
    %v27 = vld [vmem:[%s1 + $0x30] sm:$0xff]
    %v28 = vld [vmem:[%s1 + $0x38] sm:$0xff]
    %v29 = vld [vmem:[%s1 + $0x40] sm:$0xff]
    %v30 = vld [vmem:[%s1 + $0x48] sm:$0xff]
    %v31 = vld [vmem:[%s1 + $0x50] sm:$0xff]
    %v32 = vld [vmem:[%s1 + $0x58] sm:$0xff]
    %v33 = vld [vmem:[%s2] sm:$0x1]
    %v35 = vlaneseq
    %v36 = vshrl.u32 %v35, 7
    %v37 = vsub.s32 0, %v36
    %v38 = vrot.slane %v33, %v37
    %vm40 = vcmask 261120
    %v42 = vsel %vm40, %v19, 0
    %v45 = vsel %vm40, %v20, 0
    %v48 = vsel %vm40, %v21, 0
    %v51 = vsel %vm40, %v22, 0
    %v54 = vsel %vm40, %v23, 0
    %v57 = vsel %vm40, %v24, 0
    %v60 = vsel %vm40, %v25, 0
    %v63 = vsel %vm40, %v26, 0
    %v66 = vsel %vm40, %v27, 0
    %v69 = vsel %vm40, %v28, 0
    %v72 = vsel %vm40, %v29, 0
    %v75 = vsel %vm40, %v30, 0
    %v78 = vsel %vm40, %v31, 0
    %v81 = vsel %vm40, %v32, 0
    %83 = vmatprep.subr.mxu0 0.0
    %84 = vmatpush1.xpose.msra.mxu0 %v48
    %85 = vmatprep.subr.mxu0 0.0
    %86 = vmatpush1.xpose.msra.mxu0 %v51
    %87 = vmatprep.subr.mxu0 0.0
    %88 = vmatpush1.xpose.msra.mxu0 %v54
    %89 = vmatprep.subr.mxu0 0.0
    %90 = vmatpush1.xpose.msra.mxu0 %v57
    %91 = vmatprep.subr.mxu0 0.0
    %92 = vmatpush1.xpose.msra.mxu0 %v60
    %93 = vmatprep.subr.mxu0 0.0
    %94 = vmatpush1.xpose.msra.mxu0 %v63
    %95 = vmatprep.subr.mxu0 0.0
    %96 = vmatpush1.xpose.msra.mxu0 %v66
    %97 = vmatprep.subr.mxu0 0.0
    %98 = vmatpush1.xpose.msra.mxu0 %v69
    %99 = vmatprep.subr.mxu0 0.0
    %100 = vmatpush1.xpose.msra.mxu0 %v72
    %101 = vmatprep.subr.mxu0 0.0
    %102 = vmatpush1.xpose.msra.mxu0 %v75
    %103 = vmatprep.subr.mxu0 0.0
    %104 = vmatpush1.xpose.msra.mxu0 %v78
    %105 = vmatprep.subr.mxu0 0.0
    %106 = vmatpush1.xpose.msra.mxu0 %v81
    %107 = vmatprep.subr.mxu0 0.0
    %108 = vmatpush1.xpose.msra.mxu0 0.0
    %109 = vmatprep.subr.mxu0 0.0
    %110 = vmatpush1.xpose.msra.mxu0 0.0
    %111 = vmatprep.subr.mxu0 0.0
    %112 = vmatpush1.xpose.msra.mxu0 0.0
    %113 = vmatprep.subr.mxu0 0.0
    %114 = vmatpush1.xpose.msra.mxu0 0.0
    %115 = vmatprep.subr.mxu0 0.0
    %116 = vmatpush1.xpose.msra.mxu0 0.0
    %117 = vmatprep.subr.mxu0 0.0
    %118 = vmatpush1.xpose.msra.mxu0 0.0
    %119 = vmatprep.subr.mxu0 0.0
    %120 = vmatpush1.xpose.msra.mxu0 0.0
    %121 = vmatprep.subr.mxu0 0.0
    %122 = vmatpush1.xpose.msra.mxu0 0.0
    %123 = vmatprep.subr.mxu0 0.0
    %124 = vmatpush1.xpose.msra.mxu0 0.0
    %125 = vmatprep.subr.mxu0 0.0
    %126 = vmatpush1.xpose.msra.mxu0 0.0
    %127 = vmatprep.subr.mxu0 0.0
    %128 = vmatpush1.xpose.msra.mxu0 0.0
    %129 = vmatprep.subr.mxu0 0.0
    %130 = vmatpush1.xpose.msra.mxu0 0.0
    %131 = vmatprep.subr.mxu0 0.0
    %132 = vmatpush1.xpose.msra.mxu0 0.0
    %133 = vmatprep.subr.mxu0 0.0
    %134 = vmatpush1.xpose.msra.mxu0 0.0
    %135 = vmatprep.subr.mxu0 0.0
    %136 = vmatpush1.xpose.msra.mxu0 0.0
    %137 = vmatprep.subr.mxu0 0.0
    %138 = vmatpush1.xpose.msra.mxu0 0.0
    %139 = vmatprep.subr.mxu0 0.0
    %140 = vmatpush1.xpose.msra.mxu0 0.0
    %141 = vmatprep.subr.mxu0 0.0
    %142 = vmatpush1.xpose.msra.mxu0 0.0
    %143 = vmatprep.subr.mxu0 0.0
    %144 = vmatpush1.xpose.msra.mxu0 0.0
    %145 = vmatprep.subr.mxu0 0.0
    %146 = vmatpush1.xpose.msra.mxu0 0.0
    %147 = vmatprep.mubr.f32.mxu0 0.0
    %148 = vmatmul.mubr.f32.gmra.mrb[0].mxu0 %v42
    %v149 = vpop.f32.mrb[0].mxu0
    %v150 = vadd.f32 %v38, %v149
    %v151 = vpop.f32.mrb[0].mxu0
    %152 = vmatprep.mubr.f32.mxu0 0.0
    %153 = vmatmul.mubr.f32.gmra.mrb[0].mxu0 %v45
    %v154 = vpop.f32.mrb[0].mxu0
    %v155 = vadd.f32 %v38, %v154
    %v156 = vpop.f32.mrb[0].mxu0
    %157 = vdwg.mxu0
    %158 = vst.msk [vmem:[#allocation2] sm:$0xff] %vm40, %v150
    %159 = vst.msk [vmem:[#allocation2 + $0x8] sm:$0xff] %vm40, %v155
    %162 = vrot.lane.b32.xlu0 %v150, 96
    %v163 = vpop.permute.xlu0 %162
    %164 = vrot.lane.b32.xlu0 %v155, 96
    %v165 = vpop.permute.xlu0 %164
    %168 = vst.msk [vmem:[#allocation4] sm:$0xff] %vm40, %v163
    %169 = vst.msk [vmem:[#allocation4 + $0x8] sm:$0xff] %vm40, %v165
    %170 = vrot.lane.b32.xlu0 %v150, 64
    %v171 = vpop.permute.xlu0 %170
    %172 = vrot.lane.b32.xlu0 %v155, 64
    %v173 = vpop.permute.xlu0 %172
    %176 = vst.msk [vmem:[#allocation6] sm:$0xff] %vm40, %v171
    %177 = vst.msk [vmem:[#allocation6 + $0x8] sm:$0xff] %vm40, %v173
    // Predicated region
    $region14: #{tpu_custom_call.1} parent=1 // pred_check
      _
    $region15: #{tpu_custom_call.1} parent=1 // pred_check_branch
      %179 = sbr.rel (0) target = $region17
    $region16: #{tpu_custom_call.1} parent=1 // pred_region
      %s181 = ssub.s32 256, 256
      %182 = vsyncadd [#allocation3], %s181
      %s183 = sshll.u32 [#allocation2], 4
      %s184 = int_to_ptr.vmem [resolvable:$true] %s183
      %189 = dma.vmem_to_hbm [thread:$0]  %s184, 256, %s3, [#allocation3], 128, 128, 8
    $region17: #{tpu_custom_call.1} parent=1 // pred_fallthru
      _
    // Predicated region
    $region18: #{tpu_custom_call.1} parent=1 // pred_check
      _
    $region19: #{tpu_custom_call.1} parent=1 // pred_check_branch
      %191 = sbr.rel (0) target = $region21
    $region20: #{tpu_custom_call.1} parent=1 // pred_region
      %s193 = ssub.s32 256, 256
      %194 = vsyncadd [#allocation5], %s193
      %s195 = sshll.u32 [#allocation4], 4
      %s196 = int_to_ptr.vmem [resolvable:$true] %s195
      %201 = dma.vmem_to_hbm [thread:$0]  %s196, 256, %s4, [#allocation5], 128, 128, 8
    $region21: #{tpu_custom_call.1} parent=1 // pred_fallthru
      _
    // Predicated region
    $region22: #{tpu_custom_call.1} parent=1 // pred_check
      _
    $region23: #{tpu_custom_call.1} parent=1 // pred_check_branch
      %203 = sbr.rel (0) target = $region25
    $region24: #{tpu_custom_call.1} parent=1 // pred_region
      %s205 = ssub.s32 256, 256
      %206 = vsyncadd [#allocation5], %s205
      %s207 = sshll.u32 [#allocation6], 4
      %s208 = int_to_ptr.vmem [resolvable:$true] %s207
      %213 = dma.vmem_to_hbm [thread:$0]  %s208, 256, %s5, [#allocation5], 128, 128, 8
    $region25: #{tpu_custom_call.1} parent=1 // pred_fallthru
      _
    // Predicated region
    $region26: #{tpu_custom_call.1} parent=1 // pred_check
      _
    $region27: #{tpu_custom_call.1} parent=1 // pred_check_branch
      %215 = sbr.rel (0) target = $region29
    $region28: #{tpu_custom_call.1} parent=1 // pred_region
      %216 = dma.done [#allocation3], 256
    $region29: #{tpu_custom_call.1} parent=1 // pred_fallthru
      _
    // Predicated region
    $region30: #{tpu_custom_call.1} parent=1 // pred_check
      _
    $region31: #{tpu_custom_call.1} parent=1 // pred_check_branch
      %218 = sbr.rel (0) target = $region33
    $region32: #{tpu_custom_call.1} parent=1 // pred_region
      %219 = dma.done [#allocation5], 256
    $region33: #{tpu_custom_call.1} parent=1 // pred_fallthru
      _
    // Predicated region
    $region34: #{tpu_custom_call.1} parent=1 // pred_check
      _
    $region35: #{tpu_custom_call.1} parent=1 // pred_check_branch
      %221 = sbr.rel (0) target = $region37
    $region36: #{tpu_custom_call.1} parent=1 // pred_region
      %222 = dma.done [#allocation5], 256
    $region37: #{tpu_custom_call.1} parent=1 // pred_fallthru
      _
    %223 = vsyncpa [#allocation3], 1
    %224 = vsyncpa [#allocation5], 1

</llo_original>
